<compile_context>
chip_gen: v7x
topology: tpu7x:2x2x1
jax: 0.10.0
libtpu: 0.0.40
codegen_flags: <defaults>
</compile_context>

<pallas_src>
import functools

import jax
import jax.numpy as jnp
from jax import lax
from jax.experimental import pallas as pl
from jax.experimental.pallas import tpu as pltpu

EPS = 1e-5  # torch.nn.LayerNorm default


def _body_proj_kernel(x_ref, w_ref, gb_ref, o_ref, *, num_tokens, d):
    # x_ref:  (Bp, Kp)   batch (padded to 8 sublanes), ones column folds the bias in
    # w_ref:  (Kp, T*D)  augmented weight (bias row), per-token column-centered
    # gb_ref: (2, D)     row 0 = gamma, row 1 = beta
    # o_ref:  (Bp, T*D)  lane-dense output slab
    proj = jnp.dot(x_ref[...], w_ref[...], preferred_element_type=jnp.float32)

    g = gb_ref[0:1, :]
    beta = gb_ref[1:2, :]

    for t in range(num_tokens):  # static unroll; slices are 128-lane aligned
        sl = proj[:, t * d:(t + 1) * d]
        # Weights are pre-centered per token block, so mean(sl) == 0 analytically.
        var = jnp.mean(sl * sl, axis=-1, keepdims=True)
        normed = sl * lax.rsqrt(var + EPS)
        o_ref[:, t * d:(t + 1) * d] = (normed * g + beta).astype(o_ref.dtype)


def body_proj_model(body_vector, w, b, gamma, beta, *, num_tokens,
                    cross_attention_dim):
    """body_vector: (B, body_dim); w: (body_dim, num_tokens*D); b: (num_tokens*D,)
    gamma, beta: (D,). Returns (B, num_tokens, D) matching the PyTorch module."""
    B, K = body_vector.shape
    D = cross_attention_dim
    T = num_tokens
    N = T * D
    assert w.shape == (K, N)
    assert D % 128 == 0, "per-token slices must be 128-lane aligned"

    f32 = jnp.float32

    # 1) Fold the Linear bias into an augmented weight (ones column on x); pad the
    #    contraction dim to a multiple of 8 for sublane alignment.
    Kp = ((K + 1 + 7) // 8) * 8
    w_aug = (jnp.zeros((Kp, N), f32)
             .at[:K, :].set(w.astype(f32))
             .at[K, :].set(b.astype(f32)))

    # 2) Pre-center each token block column-wise: mean_d(x @ W_t + b_t) == 0, so the
    #    in-kernel LayerNorm skips the mean reduction and centering subtract.
    w_blocks = w_aug.reshape(Kp, T, D)
    w_aug = (w_blocks - jnp.mean(w_blocks, axis=-1, keepdims=True)).reshape(Kp, N)

    # 3) Pack gamma/beta into a single (2, D) operand (one DMA instead of two).
    gb = jnp.stack([gamma.astype(f32), beta.astype(f32)], axis=0)

    # 4) Pad batch to a multiple of 8 sublanes (zero rows normalize to beta; sliced off).
    Bp = max(8, ((B + 7) // 8) * 8)
    x_aug = (jnp.zeros((Bp, Kp), f32)
             .at[:B, :K].set(body_vector.astype(f32))
             .at[:B, K].set(1.0))

    kernel = functools.partial(_body_proj_kernel, num_tokens=T, d=D)
    vmem_spec = pl.BlockSpec(memory_space=pltpu.MemorySpace.VMEM)

    cost = pl.CostEstimate(
        flops=2 * Bp * Kp * N,
        transcendentals=Bp * T,  # one rsqrt per (row, token)
        bytes_accessed=4 * (Bp * Kp + Kp * N + 2 * D + Bp * N),
    )

    out_flat = pl.pallas_call(
        kernel,
        out_shape=jax.ShapeDtypeStruct((Bp, N), body_vector.dtype),
        in_specs=[vmem_spec] * 3,
        out_specs=vmem_spec,
        cost_estimate=cost,
    )(x_aug, w_aug, gb)

    # Drop batch padding; free relayout (Bp, T*D) -> (B, T, D), same as torch reshape.
    return out_flat[:B].reshape(B, T, D)


def _reference(body_vector, w, b, gamma, beta, *, num_tokens,
               cross_attention_dim):
    proj = body_vector @ w + b
    proj = proj.reshape(-1, num_tokens, cross_attention_dim)
    mean = jnp.mean(proj, axis=-1, keepdims=True)
    var = jnp.mean((proj - mean) ** 2, axis=-1, keepdims=True)
    return (proj - mean) * lax.rsqrt(var + EPS) * gamma + beta


if __name__ == "__main__":
    # Small shapes consistent with the module's forward.
    B = 2
    body_dim = 256
    cross_attention_dim = 128
    num_tokens = 4

    key = jax.random.PRNGKey(0)
    kx, kw, kb = jax.random.split(key, 3)

    body_vector = jax.random.normal(kx, (B, body_dim), dtype=jnp.float32)

    # Linear(body_dim, num_tokens * cross_attention_dim): weight stored as (in, out).
    w = jax.random.normal(kw, (body_dim, num_tokens * cross_attention_dim),
                          dtype=jnp.float32) * (1.0 / jnp.sqrt(body_dim))
    b = jax.random.normal(kb, (num_tokens * cross_attention_dim,),
                          dtype=jnp.float32) * 0.01
    # LayerNorm(cross_attention_dim) default init: gamma=1, beta=0.
    gamma = jnp.ones((cross_attention_dim,), dtype=jnp.float32)
    beta = jnp.zeros((cross_attention_dim,), dtype=jnp.float32)

    out = body_proj_model(body_vector, w, b, gamma, beta,
                          num_tokens=num_tokens,
                          cross_attention_dim=cross_attention_dim)
    out = jax.block_until_ready(out)

    ref = _reference(body_vector, w, b, gamma, beta,
                     num_tokens=num_tokens,
                     cross_attention_dim=cross_attention_dim)
    assert out.shape == (B, num_tokens, cross_attention_dim)
    assert jnp.allclose(out, ref, atol=1e-4, rtol=1e-4)

    print("KERNEL_OK")
</pallas_src>

<mosaic_0001>
module attributes {stable_mosaic.version = 11 : i64} {
  func.func @_body_proj_kernel(%arg0: memref<8x264xf32, #tpu.memory_space<vmem>>, %arg1: memref<264x512xf32, #tpu.memory_space<vmem>>, %arg2: memref<2x128xf32, #tpu.memory_space<vmem>>, %arg3: memref<8x512xf32, #tpu.memory_space<vmem>>) attributes {dimension_semantics = [], scalar_prefetch = 0 : i64, scratch_operands = 0 : i64, tpu.core_type = #tpu.core_type<tc>} {
    %c0 = arith.constant 0 : index
    %c0_0 = arith.constant 0 : index
    %0 = vector.load %arg0[%c0, %c0_0] : memref<8x264xf32, #tpu.memory_space<vmem>>, vector<8x264xf32>
    %c0_1 = arith.constant 0 : index
    %c0_2 = arith.constant 0 : index
    %1 = vector.load %arg1[%c0_1, %c0_2] : memref<264x512xf32, #tpu.memory_space<vmem>>, vector<264x512xf32>
    %cst = arith.constant dense<0.000000e+00> : vector<8x512xf32>
    %2 = tpu.matmul %0, %1, %cst {dimension_numbers = #tpu.dot_dimension_numbers<[1], [0], [0], [1], [0, 0, 1, 1], [], []>} : vector<8x264xf32>, vector<264x512xf32>, vector<8x512xf32> -> vector<8x512xf32>
    %c0_3 = arith.constant 0 : index
    %c0_4 = arith.constant 0 : index
    %3 = vector.load %arg2[%c0_3, %c0_4] : memref<2x128xf32, #tpu.memory_space<vmem>>, vector<1x128xf32>
    %c1 = arith.constant 1 : index
    %c0_5 = arith.constant 0 : index
    %4 = vector.load %arg2[%c1, %c0_5] : memref<2x128xf32, #tpu.memory_space<vmem>>, vector<1x128xf32>
    %5 = vector.extract_strided_slice %2 {offsets = [0, 0], sizes = [8, 128], strides = [1, 1]} : vector<8x512xf32> to vector<8x128xf32>
    %6 = arith.mulf %5, %5 : vector<8x128xf32>
    %cst_6 = arith.constant dense<0.000000e+00> : vector<8xf32>
    %7 = vector.multi_reduction <add>, %6, %cst_6 [1] : vector<8x128xf32> to vector<8xf32>
    %8 = vector.shape_cast %7 : vector<8xf32> to vector<8x1xf32>
    %cst_7 = arith.constant 1.280000e+02 : f32
    %9 = vector.broadcast %cst_7 : f32 to vector<8x1xf32>
    %10 = arith.divf %8, %9 : vector<8x1xf32>
    %cst_8 = arith.constant 9.99999974E-6 : f32
    %11 = vector.broadcast %cst_8 : f32 to vector<8x1xf32>
    %12 = arith.addf %10, %11 : vector<8x1xf32>
    %13 = math.rsqrt %12 : vector<8x1xf32>
    %14 = vector.broadcast %13 : vector<8x1xf32> to vector<8x128xf32>
    %15 = arith.mulf %5, %14 : vector<8x128xf32>
    %16 = vector.broadcast %3 : vector<1x128xf32> to vector<8x128xf32>
    %17 = arith.mulf %15, %16 : vector<8x128xf32>
    %18 = vector.broadcast %4 : vector<1x128xf32> to vector<8x128xf32>
    %19 = arith.addf %17, %18 : vector<8x128xf32>
    %c0_9 = arith.constant 0 : index
    %c0_10 = arith.constant 0 : index
    %20 = vector.load %arg3[%c0_9, %c0_10] : memref<8x512xf32, #tpu.memory_space<vmem>>, vector<8x128xf32>
    tpu.vector_store %arg3[%c0_9, %c0_10], %19 {strides = array<i32>} : memref<8x512xf32, #tpu.memory_space<vmem>>, vector<8x128xf32>,
    %21 = vector.extract_strided_slice %2 {offsets = [0, 128], sizes = [8, 128], strides = [1, 1]} : vector<8x512xf32> to vector<8x128xf32>
    %22 = arith.mulf %21, %21 : vector<8x128xf32>
    %cst_11 = arith.constant dense<0.000000e+00> : vector<8xf32>
    %23 = vector.multi_reduction <add>, %22, %cst_11 [1] : vector<8x128xf32> to vector<8xf32>
    %24 = vector.shape_cast %23 : vector<8xf32> to vector<8x1xf32>
    %cst_12 = arith.constant 1.280000e+02 : f32
    %25 = vector.broadcast %cst_12 : f32 to vector<8x1xf32>
    %26 = arith.divf %24, %25 : vector<8x1xf32>
    %cst_13 = arith.constant 9.99999974E-6 : f32
    %27 = vector.broadcast %cst_13 : f32 to vector<8x1xf32>
    %28 = arith.addf %26, %27 : vector<8x1xf32>
    %29 = math.rsqrt %28 : vector<8x1xf32>
    %30 = vector.broadcast %29 : vector<8x1xf32> to vector<8x128xf32>
    %31 = arith.mulf %21, %30 : vector<8x128xf32>
    %32 = vector.broadcast %3 : vector<1x128xf32> to vector<8x128xf32>
    %33 = arith.mulf %31, %32 : vector<8x128xf32>
    %34 = vector.broadcast %4 : vector<1x128xf32> to vector<8x128xf32>
    %35 = arith.addf %33, %34 : vector<8x128xf32>
    %c0_14 = arith.constant 0 : index
    %c128 = arith.constant 128 : index
    %36 = vector.load %arg3[%c0_14, %c128] : memref<8x512xf32, #tpu.memory_space<vmem>>, vector<8x128xf32>
    tpu.vector_store %arg3[%c0_14, %c128], %35 {strides = array<i32>} : memref<8x512xf32, #tpu.memory_space<vmem>>, vector<8x128xf32>,
    %37 = vector.extract_strided_slice %2 {offsets = [0, 256], sizes = [8, 128], strides = [1, 1]} : vector<8x512xf32> to vector<8x128xf32>
    %38 = arith.mulf %37, %37 : vector<8x128xf32>
    %cst_15 = arith.constant dense<0.000000e+00> : vector<8xf32>
    %39 = vector.multi_reduction <add>, %38, %cst_15 [1] : vector<8x128xf32> to vector<8xf32>
    %40 = vector.shape_cast %39 : vector<8xf32> to vector<8x1xf32>
    %cst_16 = arith.constant 1.280000e+02 : f32
    %41 = vector.broadcast %cst_16 : f32 to vector<8x1xf32>
    %42 = arith.divf %40, %41 : vector<8x1xf32>
    %cst_17 = arith.constant 9.99999974E-6 : f32
    %43 = vector.broadcast %cst_17 : f32 to vector<8x1xf32>
    %44 = arith.addf %42, %43 : vector<8x1xf32>
    %45 = math.rsqrt %44 : vector<8x1xf32>
    %46 = vector.broadcast %45 : vector<8x1xf32> to vector<8x128xf32>
    %47 = arith.mulf %37, %46 : vector<8x128xf32>
    %48 = vector.broadcast %3 : vector<1x128xf32> to vector<8x128xf32>
    %49 = arith.mulf %47, %48 : vector<8x128xf32>
    %50 = vector.broadcast %4 : vector<1x128xf32> to vector<8x128xf32>
    %51 = arith.addf %49, %50 : vector<8x128xf32>
    %c0_18 = arith.constant 0 : index
    %c256 = arith.constant 256 : index
    %52 = vector.load %arg3[%c0_18, %c256] : memref<8x512xf32, #tpu.memory_space<vmem>>, vector<8x128xf32>
    tpu.vector_store %arg3[%c0_18, %c256], %51 {strides = array<i32>} : memref<8x512xf32, #tpu.memory_space<vmem>>, vector<8x128xf32>,
    %53 = vector.extract_strided_slice %2 {offsets = [0, 384], sizes = [8, 128], strides = [1, 1]} : vector<8x512xf32> to vector<8x128xf32>
    %54 = arith.mulf %53, %53 : vector<8x128xf32>
    %cst_19 = arith.constant dense<0.000000e+00> : vector<8xf32>
    %55 = vector.multi_reduction <add>, %54, %cst_19 [1] : vector<8x128xf32> to vector<8xf32>
    %56 = vector.shape_cast %55 : vector<8xf32> to vector<8x1xf32>
    %cst_20 = arith.constant 1.280000e+02 : f32
    %57 = vector.broadcast %cst_20 : f32 to vector<8x1xf32>
    %58 = arith.divf %56, %57 : vector<8x1xf32>
    %cst_21 = arith.constant 9.99999974E-6 : f32
    %59 = vector.broadcast %cst_21 : f32 to vector<8x1xf32>
    %60 = arith.addf %58, %59 : vector<8x1xf32>
    %61 = math.rsqrt %60 : vector<8x1xf32>
    %62 = vector.broadcast %61 : vector<8x1xf32> to vector<8x128xf32>
    %63 = arith.mulf %53, %62 : vector<8x128xf32>
    %64 = vector.broadcast %3 : vector<1x128xf32> to vector<8x128xf32>
    %65 = arith.mulf %63, %64 : vector<8x128xf32>
    %66 = vector.broadcast %4 : vector<1x128xf32> to vector<8x128xf32>
    %67 = arith.addf %65, %66 : vector<8x128xf32>
    %c0_22 = arith.constant 0 : index
    %c384 = arith.constant 384 : index
    %68 = vector.load %arg3[%c0_22, %c384] : memref<8x512xf32, #tpu.memory_space<vmem>>, vector<8x128xf32>
    tpu.vector_store %arg3[%c0_22, %c384], %67 {strides = array<i32>} : memref<8x512xf32, #tpu.memory_space<vmem>>, vector<8x128xf32>,
    return
  }
}

</mosaic_0001>

<llo_original>
// kernel: tpu_custom_call.1
$region0: #{tpu_custom_call.1}
  #allocation0 [shape = 'u32[]', space=smem, size = 0x4, offset = 0x4, fixed_abs, tag = 'smem constant byte address 0x4 - core index']
  #allocation1 [shape = 'u32[144,128]{1,0:T(1,128)}', space=vmem, size = 0x12000, scoped, tag = 'internal scratch']
  %s0 = inlined_call_operand.hbm [shape: f32[8,264], index: 0, kind: input, shape index: {}]
  %s1 = inlined_call_operand.hbm [shape: f32[264,512], index: 1, kind: input, shape index: {}]
  %s2 = inlined_call_operand.vmem [shape: f32[2,128], index: 2, kind: input, shape index: {}]
  %s3 = inlined_call_operand.hbm [shape: f32[8,512], index: 3, kind: output, shape index: {}]
  %s4 = sld [smem:[#allocation0]]
  $region30: #{tpu_custom_call.1} parent=0
    _
  %s6 = ssub.s32 1, %s4
  %s7 = scalar_select 0, %s6, %s4
  $region1: #{tpu_custom_call.1} parent=0
    #allocation2 [shape = 'u8[12288]{0}', space=vmem, size = 0x3000, scoped, tag = 'input window, operand 0, single buffered']
    #allocation3 [shape = 's32[1]{0}', space=sflag, size = 0x4, scoped, tag = 'scoped memory for tpu_custom_call.1']
    #allocation4 [shape = 's32[1]{0}', space=sflag, size = 0x4, scoped, tag = 'scoped memory for tpu_custom_call.1']
    #allocation5 [shape = 'u8[540672]{0}', space=vmem, size = 0x84000, scoped, tag = 'input window, operand 1, single buffered']
    #allocation6 [shape = 's32[1]{0}', space=sflag, size = 0x4, scoped, tag = 'scoped memory for tpu_custom_call.1']
    #allocation7 [shape = 'u8[16384]{0}', space=vmem, size = 0x4000, scoped, tag = 'output window, operand 0, single buffered']
    %8 = vsyncpa [#allocation3], 0
    %9 = vsyncpa [#allocation6], 0
    %10 = vsyncpa [#allocation4], 0
    // Predicated region
    $region2: #{tpu_custom_call.1} parent=1 // pred_check
      _
    $region3: #{tpu_custom_call.1} parent=1 // pred_check_branch
      %12 = sbr.rel (0) target = $region5
    $region4: #{tpu_custom_call.1} parent=1 // pred_region
      %s14 = ssub.s32 384, 384
      %15 = vsyncadd [#allocation3], %s14
      %s17 = sshll.u32 [#allocation2], 4
      %s18 = int_to_ptr.vmem [resolvable:$true] %s17
      %20 = dma.hbm_to_vmem [thread:$0]  %s0, 384, %s18, [#allocation3]
    $region5: #{tpu_custom_call.1} parent=1 // pred_fallthru
      _
    // Predicated region
    $region6: #{tpu_custom_call.1} parent=1 // pred_check
      _
    $region7: #{tpu_custom_call.1} parent=1 // pred_check_branch
      %22 = sbr.rel (0) target = $region9
    $region8: #{tpu_custom_call.1} parent=1 // pred_region
      %s24 = ssub.s32 16896, 16896
      %25 = vsyncadd [#allocation6], %s24
      %s26 = sshll.u32 [#allocation5], 4
      %s27 = int_to_ptr.vmem [resolvable:$true] %s26
      %32 = dma.hbm_to_vmem [thread:$0]  %s1, 16896, %s27, [#allocation6], 512, 512, 32
    $region9: #{tpu_custom_call.1} parent=1 // pred_fallthru
      _
    // Predicated region
    $region10: #{tpu_custom_call.1} parent=1 // pred_check
      _
    $region11: #{tpu_custom_call.1} parent=1 // pred_check_branch
      %34 = sbr.rel (0) target = $region13
    $region12: #{tpu_custom_call.1} parent=1 // pred_region
      _
    $region13: #{tpu_custom_call.1} parent=1 // pred_fallthru
      _
    // Predicated region
    $region14: #{tpu_custom_call.1} parent=1 // pred_check
      _
    $region15: #{tpu_custom_call.1} parent=1 // pred_check_branch
      %36 = sbr.rel (0) target = $region17
    $region16: #{tpu_custom_call.1} parent=1 // pred_region
      %37 = dma.done [#allocation3], 384
    $region17: #{tpu_custom_call.1} parent=1 // pred_fallthru
      _
    // Predicated region
    $region18: #{tpu_custom_call.1} parent=1 // pred_check
      _
    $region19: #{tpu_custom_call.1} parent=1 // pred_check_branch
      %39 = sbr.rel (0) target = $region21
    $region20: #{tpu_custom_call.1} parent=1 // pred_region
      %40 = dma.done [#allocation6], 16896
    $region21: #{tpu_custom_call.1} parent=1 // pred_fallthru
      _
    %v41 = vld [vmem:[#allocation2] sm:$0xff]
    %v42 = vld [vmem:[#allocation2 + $0x8] sm:$0xff]
    %v43 = vld [vmem:[#allocation2 + $0x10] sm:$0xff]
    %v44 = vld [vmem:[#allocation5] sm:$0xff]
    %v45 = vld [vmem:[#allocation5 + $0x8] sm:$0xff]
    %v46 = vld [vmem:[#allocation5 + $0x10] sm:$0xff]
    %v47 = vld [vmem:[#allocation5 + $0x18] sm:$0xff]
    %v48 = vld [vmem:[#allocation5 + $0x20] sm:$0xff]
    %v49 = vld [vmem:[#allocation5 + $0x28] sm:$0xff]
    %v50 = vld [vmem:[#allocation5 + $0x30] sm:$0xff]
    %v51 = vld [vmem:[#allocation5 + $0x38] sm:$0xff]
    %v52 = vld [vmem:[#allocation5 + $0x40] sm:$0xff]
    %v53 = vld [vmem:[#allocation5 + $0x48] sm:$0xff]
    %v54 = vld [vmem:[#allocation5 + $0x50] sm:$0xff]
    %v55 = vld [vmem:[#allocation5 + $0x58] sm:$0xff]
    %v56 = vld [vmem:[#allocation5 + $0x60] sm:$0xff]
    %v57 = vld [vmem:[#allocation5 + $0x68] sm:$0xff]
    %v58 = vld [vmem:[#allocation5 + $0x70] sm:$0xff]
    %v59 = vld [vmem:[#allocation5 + $0x78] sm:$0xff]
    %v60 = vld [vmem:[#allocation5 + $0x80] sm:$0xff]
    %v61 = vld [vmem:[#allocation5 + $0x88] sm:$0xff]
    %v62 = vld [vmem:[#allocation5 + $0x90] sm:$0xff]
    %v63 = vld [vmem:[#allocation5 + $0x98] sm:$0xff]
    %v64 = vld [vmem:[#allocation5 + $0xa0] sm:$0xff]
    %v65 = vld [vmem:[#allocation5 + $0xa8] sm:$0xff]
    %v66 = vld [vmem:[#allocation5 + $0xb0] sm:$0xff]
    %v67 = vld [vmem:[#allocation5 + $0xb8] sm:$0xff]
    %v68 = vld [vmem:[#allocation5 + $0xc0] sm:$0xff]
    %v69 = vld [vmem:[#allocation5 + $0xc8] sm:$0xff]
    %v70 = vld [vmem:[#allocation5 + $0xd0] sm:$0xff]
    %v71 = vld [vmem:[#allocation5 + $0xd8] sm:$0xff]
    %v72 = vld [vmem:[#allocation5 + $0xe0] sm:$0xff]
    %v73 = vld [vmem:[#allocation5 + $0xe8] sm:$0xff]
    %v74 = vld [vmem:[#allocation5 + $0xf0] sm:$0xff]
    %v75 = vld [vmem:[#allocation5 + $0xf8] sm:$0xff]
    %v76 = vld [vmem:[#allocation5 + $0x100] sm:$0xff]
    %v77 = vld [vmem:[#allocation5 + $0x108] sm:$0xff]
    %v78 = vld [vmem:[#allocation5 + $0x110] sm:$0xff]
    %v79 = vld [vmem:[#allocation5 + $0x118] sm:$0xff]
    %v80 = vld [vmem:[#allocation5 + $0x120] sm:$0xff]
    %v81 = vld [vmem:[#allocation5 + $0x128] sm:$0xff]
    %v82 = vld [vmem:[#allocation5 + $0x130] sm:$0xff]
    %v83 = vld [vmem:[#allocation5 + $0x138] sm:$0xff]
    %v84 = vld [vmem:[#allocation5 + $0x140] sm:$0xff]
    %v85 = vld [vmem:[#allocation5 + $0x148] sm:$0xff]
    %v86 = vld [vmem:[#allocation5 + $0x150] sm:$0xff]
    %v87 = vld [vmem:[#allocation5 + $0x158] sm:$0xff]
    %v88 = vld [vmem:[#allocation5 + $0x160] sm:$0xff]
    %v89 = vld [vmem:[#allocation5 + $0x168] sm:$0xff]
    %v90 = vld [vmem:[#allocation5 + $0x170] sm:$0xff]
    %v91 = vld [vmem:[#allocation5 + $0x178] sm:$0xff]
    %v92 = vld [vmem:[#allocation5 + $0x180] sm:$0xff]
    %v93 = vld [vmem:[#allocation5 + $0x188] sm:$0xff]
    %v94 = vld [vmem:[#allocation5 + $0x190] sm:$0xff]
    %v95 = vld [vmem:[#allocation5 + $0x198] sm:$0xff]
    %v96 = vld [vmem:[#allocation5 + $0x1a0] sm:$0xff]
    %v97 = vld [vmem:[#allocation5 + $0x1a8] sm:$0xff]
    %v98 = vld [vmem:[#allocation5 + $0x1b0] sm:$0xff]
    %v99 = vld [vmem:[#allocation5 + $0x1b8] sm:$0xff]
    %v100 = vld [vmem:[#allocation5 + $0x1c0] sm:$0xff]
    %v101 = vld [vmem:[#allocation5 + $0x1c8] sm:$0xff]
    %v102 = vld [vmem:[#allocation5 + $0x1d0] sm:$0xff]
    %v103 = vld [vmem:[#allocation5 + $0x1d8] sm:$0xff]
    %v104 = vld [vmem:[#allocation5 + $0x1e0] sm:$0xff]
    %v105 = vld [vmem:[#allocation5 + $0x1e8] sm:$0xff]
    %v106 = vld [vmem:[#allocation5 + $0x1f0] sm:$0xff]
    %v107 = vld [vmem:[#allocation5 + $0x1f8] sm:$0xff]
    %v108 = vld [vmem:[#allocation5 + $0x200] sm:$0xff]
    %v109 = vld [vmem:[#allocation5 + $0x208] sm:$0xff]
    %v110 = vld [vmem:[#allocation5 + $0x210] sm:$0xff]
    %v111 = vld [vmem:[#allocation5 + $0x218] sm:$0xff]
    %v112 = vld [vmem:[#allocation5 + $0x220] sm:$0xff]
    %v113 = vld [vmem:[#allocation5 + $0x228] sm:$0xff]
    %v114 = vld [vmem:[#allocation5 + $0x230] sm:$0xff]
    %v115 = vld [vmem:[#allocation5 + $0x238] sm:$0xff]
    %v116 = vld [vmem:[#allocation5 + $0x240] sm:$0xff]
    %v117 = vld [vmem:[#allocation5 + $0x248] sm:$0xff]
    %v118 = vld [vmem:[#allocation5 + $0x250] sm:$0xff]
    %v119 = vld [vmem:[#allocation5 + $0x258] sm:$0xff]
    %v120 = vld [vmem:[#allocation5 + $0x260] sm:$0xff]
    %v121 = vld [vmem:[#allocation5 + $0x268] sm:$0xff]
    %v122 = vld [vmem:[#allocation5 + $0x270] sm:$0xff]
    %v123 = vld [vmem:[#allocation5 + $0x278] sm:$0xff]
    %v124 = vld [vmem:[#allocation5 + $0x280] sm:$0xff]
    %v125 = vld [vmem:[#allocation5 + $0x288] sm:$0xff]
    %v126 = vld [vmem:[#allocation5 + $0x290] sm:$0xff]
    %v127 = vld [vmem:[#allocation5 + $0x298] sm:$0xff]
    %v128 = vld [vmem:[#allocation5 + $0x2a0] sm:$0xff]
    %v129 = vld [vmem:[#allocation5 + $0x2a8] sm:$0xff]
    %v130 = vld [vmem:[#allocation5 + $0x2b0] sm:$0xff]
    %v131 = vld [vmem:[#allocation5 + $0x2b8] sm:$0xff]
    %v132 = vld [vmem:[#allocation5 + $0x2c0] sm:$0xff]
    %v133 = vld [vmem:[#allocation5 + $0x2c8] sm:$0xff]
    %v134 = vld [vmem:[#allocation5 + $0x2d0] sm:$0xff]
    %v135 = vld [vmem:[#allocation5 + $0x2d8] sm:$0xff]
    %v136 = vld [vmem:[#allocation5 + $0x2e0] sm:$0xff]
    %v137 = vld [vmem:[#allocation5 + $0x2e8] sm:$0xff]
    %v138 = vld [vmem:[#allocation5 + $0x2f0] sm:$0xff]
    %v139 = vld [vmem:[#allocation5 + $0x2f8] sm:$0xff]
    %v140 = vld [vmem:[#allocation5 + $0x300] sm:$0xff]
    %v141 = vld [vmem:[#allocation5 + $0x308] sm:$0xff]
    %v142 = vld [vmem:[#allocation5 + $0x310] sm:$0xff]
    %v143 = vld [vmem:[#allocation5 + $0x318] sm:$0xff]
    %v144 = vld [vmem:[#allocation5 + $0x320] sm:$0xff]
    %v145 = vld [vmem:[#allocation5 + $0x328] sm:$0xff]
    %v146 = vld [vmem:[#allocation5 + $0x330] sm:$0xff]
    %v147 = vld [vmem:[#allocation5 + $0x338] sm:$0xff]
    %v148 = vld [vmem:[#allocation5 + $0x340] sm:$0xff]
    %v149 = vld [vmem:[#allocation5 + $0x348] sm:$0xff]
    %v150 = vld [vmem:[#allocation5 + $0x350] sm:$0xff]
    %v151 = vld [vmem:[#allocation5 + $0x358] sm:$0xff]
    %v152 = vld [vmem:[#allocation5 + $0x360] sm:$0xff]
    %v153 = vld [vmem:[#allocation5 + $0x368] sm:$0xff]
    %v154 = vld [vmem:[#allocation5 + $0x370] sm:$0xff]
    %v155 = vld [vmem:[#allocation5 + $0x378] sm:$0xff]
    %v156 = vld [vmem:[#allocation5 + $0x380] sm:$0xff]
    %v157 = vld [vmem:[#allocation5 + $0x388] sm:$0xff]
    %v158 = vld [vmem:[#allocation5 + $0x390] sm:$0xff]
    %v159 = vld [vmem:[#allocation5 + $0x398] sm:$0xff]
    %v160 = vld [vmem:[#allocation5 + $0x3a0] sm:$0xff]
    %v161 = vld [vmem:[#allocation5 + $0x3a8] sm:$0xff]
    %v162 = vld [vmem:[#allocation5 + $0x3b0] sm:$0xff]
    %v163 = vld [vmem:[#allocation5 + $0x3b8] sm:$0xff]
    %v164 = vld [vmem:[#allocation5 + $0x3c0] sm:$0xff]
    %v165 = vld [vmem:[#allocation5 + $0x3c8] sm:$0xff]
    %v166 = vld [vmem:[#allocation5 + $0x3d0] sm:$0xff]
    %v167 = vld [vmem:[#allocation5 + $0x3d8] sm:$0xff]
    %v168 = vld [vmem:[#allocation5 + $0x3e0] sm:$0xff]
    %v169 = vld [vmem:[#allocation5 + $0x3e8] sm:$0xff]
    %v170 = vld [vmem:[#allocation5 + $0x3f0] sm:$0xff]
    %v171 = vld [vmem:[#allocation5 + $0x3f8] sm:$0xff]
    %v172 = vld [vmem:[#allocation5 + $0x400] sm:$0xff]
    %v173 = vld [vmem:[#allocation5 + $0x408] sm:$0xff]
    %v174 = vld [vmem:[#allocation5 + $0x410] sm:$0xff]
    %v175 = vld [vmem:[#allocation5 + $0x418] sm:$0xff]
    %vm176 = vcmask 64512
    %v178 = vsel %vm176, %v43, 0
    %180 = vmatprep.subr.mxu0 %v45
    %181 = vmatpush1.msra.mxu0 %v44
    %182 = vmatprep.subr.mxu0 %v49
    %183 = vmatpush1.msra.mxu0 %v48
    %184 = vmatprep.subr.mxu0 %v53
    %185 = vmatpush1.msra.mxu0 %v52
    %186 = vmatprep.subr.mxu0 %v57
    %187 = vmatpush1.msra.mxu0 %v56
    %188 = vmatprep.subr.mxu0 %v61
    %189 = vmatpush1.msra.mxu0 %v60
    %190 = vmatprep.subr.mxu0 %v65
    %191 = vmatpush1.msra.mxu0 %v64
    %192 = vmatprep.subr.mxu0 %v69
    %193 = vmatpush1.msra.mxu0 %v68
    %194 = vmatprep.subr.mxu0 %v73
    %195 = vmatpush1.msra.mxu0 %v72
    %196 = vmatprep.subr.mxu0 %v77
    %197 = vmatpush1.msra.mxu0 %v76
    %198 = vmatprep.subr.mxu0 %v81
    %199 = vmatpush1.msra.mxu0 %v80
    %200 = vmatprep.subr.mxu0 %v85
    %201 = vmatpush1.msra.mxu0 %v84
    %202 = vmatprep.subr.mxu0 %v89
    %203 = vmatpush1.msra.mxu0 %v88
    %204 = vmatprep.subr.mxu0 %v93
    %205 = vmatpush1.msra.mxu0 %v92
    %206 = vmatprep.subr.mxu0 %v97
    %207 = vmatpush1.msra.mxu0 %v96
    %208 = vmatprep.subr.mxu0 %v101
    %209 = vmatpush1.msra.mxu0 %v100
    %210 = vmatprep.subr.mxu0 %v105
    %211 = vmatpush1.msra.mxu0 %v104
    %212 = vmatprep.subr.mxu0 %v109
    %213 = vmatpush1.msra.mxu0 %v108
    %214 = vmatprep.subr.mxu0 %v113
    %215 = vmatpush1.msra.mxu0 %v112
    %216 = vmatprep.subr.mxu0 %v117
    %217 = vmatpush1.msra.mxu0 %v116
    %218 = vmatprep.subr.mxu0 %v121
    %219 = vmatpush1.msra.mxu0 %v120
    %220 = vmatprep.subr.mxu0 %v125
    %221 = vmatpush1.msra.mxu0 %v124
    %222 = vmatprep.subr.mxu0 %v129
    %223 = vmatpush1.msra.mxu0 %v128
    %224 = vmatprep.subr.mxu0 %v133
    %225 = vmatpush1.msra.mxu0 %v132
    %226 = vmatprep.subr.mxu0 %v137
    %227 = vmatpush1.msra.mxu0 %v136
    %228 = vmatprep.subr.mxu0 %v141
    %229 = vmatpush1.msra.mxu0 %v140
    %230 = vmatprep.subr.mxu0 %v145
    %231 = vmatpush1.msra.mxu0 %v144
    %232 = vmatprep.subr.mxu0 %v149
    %233 = vmatpush1.msra.mxu0 %v148
    %234 = vmatprep.subr.mxu0 %v153
    %235 = vmatpush1.msra.mxu0 %v152
    %236 = vmatprep.subr.mxu0 %v157
    %237 = vmatpush1.msra.mxu0 %v156
    %238 = vmatprep.subr.mxu0 %v161
    %239 = vmatpush1.msra.mxu0 %v160
    %240 = vmatprep.subr.mxu0 %v165
    %241 = vmatpush1.msra.mxu0 %v164
    %242 = vmatprep.subr.mxu0 %v169
    %243 = vmatpush1.msra.mxu0 %v168
    %244 = vmatprep.mubr.f32.mxu0 %v42
    %245 = vmatmul.mubr.f32.gmra.mrb[0].mxu0 %v41
    %v246 = vpop.f32.mrb[0].mxu0
    %v247 = vadd.f32 0.0, %v246
    %v248 = vpop.f32.mrb[0].mxu0
    %v249 = vadd.f32 0.0, %v248
    %250 = vdwg.mxu0
    %251 = vmatprep.subr.mxu0 %v173
    %252 = vmatpush1.msra.mxu0 %v172
    %253 = vmatprep.subr.mxu0 0.0
    %254 = vmatpush1.msra.mxu0 0.0
    %255 = vmatprep.subr.mxu0 0.0
    %256 = vmatpush1.msra.mxu0 0.0
    %257 = vmatprep.subr.mxu0 0.0
    %258 = vmatpush1.msra.mxu0 0.0
    %259 = vmatprep.subr.mxu0 0.0
    %260 = vmatpush1.msra.mxu0 0.0
    %261 = vmatprep.subr.mxu0 0.0
    %262 = vmatpush1.msra.mxu0 0.0
    %263 = vmatprep.subr.mxu0 0.0
    %264 = vmatpush1.msra.mxu0 0.0
    %265 = vmatprep.subr.mxu0 0.0
    %266 = vmatpush1.msra.mxu0 0.0
    %267 = vmatprep.subr.mxu0 0.0
    %268 = vmatpush1.msra.mxu0 0.0
    %269 = vmatprep.subr.mxu0 0.0
    %270 = vmatpush1.msra.mxu0 0.0
    %271 = vmatprep.subr.mxu0 0.0
    %272 = vmatpush1.msra.mxu0 0.0
    %273 = vmatprep.subr.mxu0 0.0
    %274 = vmatpush1.msra.mxu0 0.0
    %275 = vmatprep.subr.mxu0 0.0
    %276 = vmatpush1.msra.mxu0 0.0
    %277 = vmatprep.subr.mxu0 0.0
    %278 = vmatpush1.msra.mxu0 0.0
    %279 = vmatprep.subr.mxu0 0.0
    %280 = vmatpush1.msra.mxu0 0.0
    %281 = vmatprep.subr.mxu0 0.0
    %282 = vmatpush1.msra.mxu0 0.0
    %283 = vmatprep.subr.mxu0 0.0
    %284 = vmatpush1.msra.mxu0 0.0
    %285 = vmatprep.subr.mxu0 0.0
    %286 = vmatpush1.msra.mxu0 0.0
    %287 = vmatprep.subr.mxu0 0.0
    %288 = vmatpush1.msra.mxu0 0.0
    %289 = vmatprep.subr.mxu0 0.0
    %290 = vmatpush1.msra.mxu0 0.0
    %291 = vmatprep.subr.mxu0 0.0
    %292 = vmatpush1.msra.mxu0 0.0
    %293 = vmatprep.subr.mxu0 0.0
    %294 = vmatpush1.msra.mxu0 0.0
    %295 = vmatprep.subr.mxu0 0.0
    %296 = vmatpush1.msra.mxu0 0.0
    %297 = vmatprep.subr.mxu0 0.0
    %298 = vmatpush1.msra.mxu0 0.0
    %299 = vmatprep.subr.mxu0 0.0
    %300 = vmatpush1.msra.mxu0 0.0
    %301 = vmatprep.subr.mxu0 0.0
    %302 = vmatpush1.msra.mxu0 0.0
    %303 = vmatprep.subr.mxu0 0.0
    %304 = vmatpush1.msra.mxu0 0.0
    %305 = vmatprep.subr.mxu0 0.0
    %306 = vmatpush1.msra.mxu0 0.0
    %307 = vmatprep.subr.mxu0 0.0
    %308 = vmatpush1.msra.mxu0 0.0
    %309 = vmatprep.subr.mxu0 0.0
    %310 = vmatpush1.msra.mxu0 0.0
    %311 = vmatprep.subr.mxu0 0.0
    %312 = vmatpush1.msra.mxu0 0.0
    %313 = vmatprep.subr.mxu0 0.0
    %314 = vmatpush1.msra.mxu0 0.0
    %315 = vmatprep.mubr.f32.mxu0 0.0
    %316 = vmatmul.mubr.f32.gmra.mrb[0].mxu0 %v178
    %v317 = vpop.f32.mrb[0].mxu0
    %v318 = vadd.f32 %v247, %v317
    %v319 = vpop.f32.mrb[0].mxu0
    %v320 = vadd.f32 %v249, %v319
    %321 = vdwg.mxu0
    %322 = vmatprep.subr.mxu0 %v47
    %323 = vmatpush1.msra.mxu0 %v46
    %324 = vmatprep.subr.mxu0 %v51
    %325 = vmatpush1.msra.mxu0 %v50
    %326 = vmatprep.subr.mxu0 %v55
    %327 = vmatpush1.msra.mxu0 %v54
    %328 = vmatprep.subr.mxu0 %v59
    %329 = vmatpush1.msra.mxu0 %v58
    %330 = vmatprep.subr.mxu0 %v63
    %331 = vmatpush1.msra.mxu0 %v62
    %332 = vmatprep.subr.mxu0 %v67
    %333 = vmatpush1.msra.mxu0 %v66
    %334 = vmatprep.subr.mxu0 %v71
    %335 = vmatpush1.msra.mxu0 %v70
    %336 = vmatprep.subr.mxu0 %v75
    %337 = vmatpush1.msra.mxu0 %v74
    %338 = vmatprep.subr.mxu0 %v79
    %339 = vmatpush1.msra.mxu0 %v78
    %340 = vmatprep.subr.mxu0 %v83
    %341 = vmatpush1.msra.mxu0 %v82
    %342 = vmatprep.subr.mxu0 %v87
    %343 = vmatpush1.msra.mxu0 %v86
    %344 = vmatprep.subr.mxu0 %v91
    %345 = vmatpush1.msra.mxu0 %v90
    %346 = vmatprep.subr.mxu0 %v95
    %347 = vmatpush1.msra.mxu0 %v94
    %348 = vmatprep.subr.mxu0 %v99
    %349 = vmatpush1.msra.mxu0 %v98
    %350 = vmatprep.subr.mxu0 %v103
    %351 = vmatpush1.msra.mxu0 %v102
    %352 = vmatprep.subr.mxu0 %v107
    %353 = vmatpush1.msra.mxu0 %v106
    %354 = vmatprep.subr.mxu0 %v111
    %355 = vmatpush1.msra.mxu0 %v110
    %356 = vmatprep.subr.mxu0 %v115
    %357 = vmatpush1.msra.mxu0 %v114
    %358 = vmatprep.subr.mxu0 %v119
    %359 = vmatpush1.msra.mxu0 %v118
    %360 = vmatprep.subr.mxu0 %v123
    %361 = vmatpush1.msra.mxu0 %v122
    %362 = vmatprep.subr.mxu0 %v127
    %363 = vmatpush1.msra.mxu0 %v126
    %364 = vmatprep.subr.mxu0 %v131
    %365 = vmatpush1.msra.mxu0 %v130
    %366 = vmatprep.subr.mxu0 %v135
    %367 = vmatpush1.msra.mxu0 %v134
    %368 = vmatprep.subr.mxu0 %v139
    %369 = vmatpush1.msra.mxu0 %v138
    %370 = vmatprep.subr.mxu0 %v143
    %371 = vmatpush1.msra.mxu0 %v142
    %372 = vmatprep.subr.mxu0 %v147
    %373 = vmatpush1.msra.mxu0 %v146
    %374 = vmatprep.subr.mxu0 %v151
    %375 = vmatpush1.msra.mxu0 %v150
    %376 = vmatprep.subr.mxu0 %v155
    %377 = vmatpush1.msra.mxu0 %v154
    %378 = vmatprep.subr.mxu0 %v159
    %379 = vmatpush1.msra.mxu0 %v158
    %380 = vmatprep.subr.mxu0 %v163
    %381 = vmatpush1.msra.mxu0 %v162
    %382 = vmatprep.subr.mxu0 %v167
    %383 = vmatpush1.msra.mxu0 %v166
    %384 = vmatprep.subr.mxu0 %v171
    %385 = vmatpush1.msra.mxu0 %v170
    %386 = vmatprep.mubr.f32.mxu0 %v42
    %387 = vmatmul.mubr.f32.gmra.mrb[0].mxu0 %v41
    %v388 = vpop.f32.mrb[0].mxu0
    %v389 = vadd.f32 0.0, %v388
    %v390 = vpop.f32.mrb[0].mxu0
    %v391 = vadd.f32 0.0, %v390
    %392 = vdwg.mxu0
    %393 = vmatprep.subr.mxu0 %v175
    %394 = vmatpush1.msra.mxu0 %v174
    %395 = vmatprep.subr.mxu0 0.0
    %396 = vmatpush1.msra.mxu0 0.0
    %397 = vmatprep.subr.mxu0 0.0
    %398 = vmatpush1.msra.mxu0 0.0
    %399 = vmatprep.subr.mxu0 0.0
    %400 = vmatpush1.msra.mxu0 0.0
    %401 = vmatprep.subr.mxu0 0.0
    %402 = vmatpush1.msra.mxu0 0.0
    %403 = vmatprep.subr.mxu0 0.0
    %404 = vmatpush1.msra.mxu0 0.0
    %405 = vmatprep.subr.mxu0 0.0
    %406 = vmatpush1.msra.mxu0 0.0
    %407 = vmatprep.subr.mxu0 0.0
    %408 = vmatpush1.msra.mxu0 0.0
    %409 = vmatprep.subr.mxu0 0.0
    %410 = vmatpush1.msra.mxu0 0.0
    %411 = vmatprep.subr.mxu0 0.0
    %412 = vmatpush1.msra.mxu0 0.0
    %413 = vmatprep.subr.mxu0 0.0
    %414 = vmatpush1.msra.mxu0 0.0
    %415 = vmatprep.subr.mxu0 0.0
    %416 = vmatpush1.msra.mxu0 0.0
    %417 = vmatprep.subr.mxu0 0.0
    %418 = vmatpush1.msra.mxu0 0.0
    %419 = vmatprep.subr.mxu0 0.0
    %420 = vmatpush1.msra.mxu0 0.0
    %421 = vmatprep.subr.mxu0 0.0
    %422 = vmatpush1.msra.mxu0 0.0
    %423 = vmatprep.subr.mxu0 0.0
    %424 = vmatpush1.msra.mxu0 0.0
    %425 = vmatprep.subr.mxu0 0.0
    %426 = vmatpush1.msra.mxu0 0.0
    %427 = vmatprep.subr.mxu0 0.0
    %428 = vmatpush1.msra.mxu0 0.0
    %429 = vmatprep.subr.mxu0 0.0
    %430 = vmatpush1.msra.mxu0 0.0
    %431 = vmatprep.subr.mxu0 0.0
    %432 = vmatpush1.msra.mxu0 0.0
    %433 = vmatprep.subr.mxu0 0.0
    %434 = vmatpush1.msra.mxu0 0.0
    %435 = vmatprep.subr.mxu0 0.0
    %436 = vmatpush1.msra.mxu0 0.0
    %437 = vmatprep.subr.mxu0 0.0
    %438 = vmatpush1.msra.mxu0 0.0
    %439 = vmatprep.subr.mxu0 0.0
    %440 = vmatpush1.msra.mxu0 0.0
    %441 = vmatprep.subr.mxu0 0.0
    %442 = vmatpush1.msra.mxu0 0.0
    %443 = vmatprep.subr.mxu0 0.0
    %444 = vmatpush1.msra.mxu0 0.0
    %445 = vmatprep.subr.mxu0 0.0
    %446 = vmatpush1.msra.mxu0 0.0
    %447 = vmatprep.subr.mxu0 0.0
    %448 = vmatpush1.msra.mxu0 0.0
    %449 = vmatprep.subr.mxu0 0.0
    %450 = vmatpush1.msra.mxu0 0.0
    %451 = vmatprep.subr.mxu0 0.0
    %452 = vmatpush1.msra.mxu0 0.0
    %453 = vmatprep.subr.mxu0 0.0
    %454 = vmatpush1.msra.mxu0 0.0
    %455 = vmatprep.subr.mxu0 0.0
    %456 = vmatpush1.msra.mxu0 0.0
    %457 = vmatprep.mubr.f32.mxu0 0.0
    %458 = vmatmul.mubr.f32.gmra.mrb[0].mxu0 %v178
    %v459 = vpop.f32.mrb[0].mxu0
    %v460 = vadd.f32 %v389, %v459
    %v461 = vpop.f32.mrb[0].mxu0
    %v462 = vadd.f32 %v391, %v461
    %463 = vdwg.mxu0
    %v464 = vld [vmem:[%s2] sm:$0x1]
    %v465 = vld [vmem:[%s2 + $0x1] sm:$0x1]
    %v466 = vmul.f32 %v318, %v318
    %467 = vadd.xlane.f32.xlu0 %v466
    %v468 = vpop.xlane.xlu0 %467
    %v469 = vrcp.pop 128.0
    %v470 = vmul.f32 %v468, %v469
    %v471 = vadd.f32 %v470, 1e-05
    %v472 = vrsqrt.pop %v471
    %v473 = vmul.f32 %v318, %v472
    %v474 = vlaneseq
    %v475 = vshrl.u32 %v474, 7
    %v476 = vsub.s32 0, %v475
    %v477 = vrot.slane %v464, %v476
    %v478 = vmul.f32 %v473, %v477
    %v479 = vlaneseq
    %v480 = vshrl.u32 %v479, 7
    %v481 = vsub.s32 0, %v480
    %v482 = vrot.slane %v465, %v481
    %v483 = vadd.f32 %v478, %v482
    %484 = vst [vmem:[#allocation7] sm:$0xff] %v483
    %v485 = vmul.f32 %v320, %v320
    %486 = vadd.xlane.f32.xlu0 %v485
    %v487 = vpop.xlane.xlu0 %486
    %v488 = vmul.f32 %v487, %v469
    %v489 = vadd.f32 %v488, 1e-05
    %v490 = vrsqrt.pop %v489
    %v491 = vmul.f32 %v320, %v490
    %v492 = vmul.f32 %v491, %v477
    %v493 = vadd.f32 %v492, %v482
    %494 = vst [vmem:[#allocation7 + $0x8] sm:$0xff] %v493
    %v495 = vmul.f32 %v460, %v460
    %496 = vadd.xlane.f32.xlu0 %v495
    %v497 = vpop.xlane.xlu0 %496
    %v498 = vmul.f32 %v497, %v469
    %v499 = vadd.f32 %v498, 1e-05
    %v500 = vrsqrt.pop %v499
    %v501 = vmul.f32 %v460, %v500
    %v502 = vmul.f32 %v501, %v477
    %v503 = vadd.f32 %v502, %v482
    %504 = vst [vmem:[#allocation7 + $0x10] sm:$0xff] %v503
    %v505 = vmul.f32 %v462, %v462
    %506 = vadd.xlane.f32.xlu0 %v505
    %v507 = vpop.xlane.xlu0 %506
    %v508 = vmul.f32 %v507, %v469
    %v509 = vadd.f32 %v508, 1e-05
    %v510 = vrsqrt.pop %v509
    %v511 = vmul.f32 %v462, %v510
    %v512 = vmul.f32 %v511, %v477
    %v513 = vadd.f32 %v512, %v482
    %514 = vst [vmem:[#allocation7 + $0x18] sm:$0xff] %v513
    // Predicated region
    $region22: #{tpu_custom_call.1} parent=1 // pred_check
      _
    $region23: #{tpu_custom_call.1} parent=1 // pred_check_branch
      %516 = sbr.rel (0) target = $region25
    $region24: #{tpu_custom_call.1} parent=1 // pred_region
      %s518 = ssub.s32 512, 512
      %519 = vsyncadd [#allocation4], %s518
      %s521 = sshll.u32 [#allocation7], 4
      %s522 = int_to_ptr.vmem [resolvable:$true] %s521
      %524 = dma.vmem_to_hbm [thread:$0]  %s522, 512, %s3, [#allocation4]
    $region25: #{tpu_custom_call.1} parent=1 // pred_fallthru
      _
    // Predicated region
    $region26: #{tpu_custom_call.1} parent=1 // pred_check
      _
    $region27: #{tpu_custom_call.1} parent=1 // pred_check_branch
      %526 = sbr.rel (0) target = $region29
    $region28: #{tpu_custom_call.1} parent=1 // pred_region
      %527 = dma.done [#allocation4], 512
    $region29: #{tpu_custom_call.1} parent=1 // pred_fallthru
      _
    %528 = vsyncpa [#allocation3], 1
    %529 = vsyncpa [#allocation6], 1
    %530 = vsyncpa [#allocation4], 1

</llo_original>
